<compile_context>
chip_gen: v7x
topology: tpu7x:2x2x1
jax: 0.10.0
libtpu: 0.0.40
codegen_flags: <defaults>
</compile_context>

<pallas_src>
import functools

import jax
import jax.numpy as jnp
from jax.experimental import pallas as pl
from jax.experimental.pallas import tpu as pltpu


_LANE = 128
_TS_MAX = 4096          # lane-tile cap; keeps per-step VMEM well under 32 MiB


def _round_up(x, m):
    return (x + m - 1) // m * m


def _pick_tile(S):
    """Largest lane tile (multiple of 128, <= _TS_MAX) with small padding of S.

    Bigger tiles amortize the ~0.35 us per-grid-step overhead; the cap keeps
    the lane-padded NHWC output blocks (a (1, ts, C) block really occupies
    ts*128*4 bytes in VMEM, not ts*C*4) inside the v7x VMEM budget."""
    S128 = _round_up(S, _LANE)
    if S128 <= _TS_MAX:
        return S128
    for ts in range(_TS_MAX, _LANE - 1, -_LANE):
        pad = _round_up(S, ts) - S
        if pad * 16 <= S:            # <= 6.25% padded cells
            return ts
    return _LANE


# --------------------------------------------------------------------------
# fused kernel: channels-last outputs written directly (no XLA permute pass)
# --------------------------------------------------------------------------
def _head_kernel(cxy_ref, p_ref, o_p_ref, o_de_ref, tr_p_ref, tr_de_ref,
                 *, stride, nC):
    """One batch element x one spatial tile per grid step.
       cxy_ref  : (2, ts)   f32   precomputed cell centers (row 0 cx, row 1 cy)
       p_ref    : (1, C, ts)      raw head output, channel-major
       o_p_ref  : (1, ts, C)      NHWC raw output (the `p` the module returns)
       o_de_ref : (1, ts, Cout)   NHWC decoded output (f32)
       tr_*_ref : (128k, ts) f32  transpose staging tiles (128-aligned source)
    """
    C = 4 + 5 + nC + 1
    Cout = C + 4
    st = jnp.float32(stride)

    cx = cxy_ref[0:1, :]
    cy = cxy_ref[1:2, :]
    p = p_ref[0].astype(jnp.float32)                 # (C, ts), upcast once

    # ---- raw head output -> channels-last via an aligned XLU transpose ----
    tr_p_ref[0:C, :] = p
    tp = jnp.transpose(tr_p_ref[...], (1, 0))        # (ts, 128), XLU
    o_p_ref[0] = tp[:, 0:C].astype(o_p_ref.dtype)

    # ---- decode ----
    l = jnp.exp(p[0:4, :]) * st                      # pred_l1234, (4, ts)
    xmin = cx - l[3:4, :]
    ymin = cy - l[0:1, :]
    xmax = cx + l[1:2, :]
    ymax = cy + l[2:3, :]

    # One EUP pass over every sigmoid channel (row 4 of `sig` = raw_r, unused).
    sig = jax.nn.sigmoid(p[4:C, :])                  # (nC + 6, ts)
    # pred_s = (clamp(sigmoid, 0.01, 1) - 0.01) / 0.99  (reciprocal multiply)
    s = (jnp.clip(sig[0:4, :], 0.01, 1.0) - 0.01) * (1.0 / 0.99)
    # pred_r = relu6(raw + 3) / 6
    r = jnp.clip(p[8:9, :] + 3.0, 0.0, 6.0) * (1.0 / 6.0)
    # zero s where r > 0.9 (single where, broadcast the 1-row predicate)
    s = jnp.where(r > 0.9, 0.0, s)

    # grouped row stores into the decode staging tile (no 13-way concat)
    tr_de_ref[0:1, :] = (xmax + xmin) * 0.5          # pred_x
    tr_de_ref[1:2, :] = (ymax + ymin) * 0.5          # pred_y
    tr_de_ref[2:3, :] = l[1:2, :] + l[3:4, :]        # pred_w
    tr_de_ref[3:4, :] = l[0:1, :] + l[2:3, :]        # pred_h
    tr_de_ref[4:8, :] = s
    tr_de_ref[8:9, :] = r
    tr_de_ref[9:13, :] = l
    tr_de_ref[13:Cout, :] = sig[5:, :]               # conf + class probs

    td = jnp.transpose(tr_de_ref[...], (1, 0))       # (ts, 128), XLU
    o_de_ref[0] = td[:, 0:Cout]


# --------------------------------------------------------------------------
# public forward
# --------------------------------------------------------------------------
def head_forward(p, nC, stride):
    """Equivalent of Head.forward (training-mode output shape for p_de).

    p : (bs, 4+5+nC+1, nG, nG) NCHW (f32 or bf16)
    returns:
      p_nhwc : (bs, nG, nG, 4+5+nC+1)        (input dtype)
      p_de   : (bs, nG, nG, 4+5+4+nC+1) f32  (decode always runs in f32)
    In eval mode PyTorch additionally does p_de.reshape(-1, Cout); pure glue.
    """
    bs, C, nG, nG2 = p.shape
    assert nG == nG2 and C == 4 + 5 + nC + 1
    Cout = C + 4
    S = nG * nG
    ts = _pick_tile(S)
    Sp = _round_up(S, ts)

    p_flat = p.reshape(bs, C, S)
    if Sp != S:
        # <= 6.25% zero padding so the fused lane-dense kernel handles every
        # GGHL grid size (nG = 25/50/100, ...); padded cells are sliced off.
        p_flat = jnp.pad(p_flat, ((0, 0), (0, 0), (0, Sp - S)))

    # Batch-invariant cell centers, computed once outside the kernel
    # (no per-step integer div/mod on the VPU).
    fstride = float(stride)
    lin = jnp.arange(Sp, dtype=jnp.int32)
    cx = (lin % nG).astype(jnp.float32) * fstride + 0.5 * fstride
    cy = (lin // nG).astype(jnp.float32) * fstride + 0.5 * fstride
    cxy = jnp.stack([cx, cy], axis=0)                # (2, Sp) f32

    # Transpose sources must be 128-aligned in both minor dims (Mosaic rejects
    # padded transposes); sizing from C/Cout also keeps large-nC configs safe.
    rp = _round_up(C, _LANE)
    rde = _round_up(Cout, _LANE)

    kernel = functools.partial(_head_kernel, stride=fstride, nC=nC)
    p_nhwc_flat, de_flat = pl.pallas_call(
        kernel,
        out_shape=(jax.ShapeDtypeStruct((bs, Sp, C), p.dtype),
                   jax.ShapeDtypeStruct((bs, Sp, Cout), jnp.float32)),
        grid=(bs, Sp // ts),
        in_specs=[pl.BlockSpec((2, ts), lambda b, t: (0, t)),
                  pl.BlockSpec((1, C, ts), lambda b, t: (b, 0, t))],
        out_specs=(pl.BlockSpec((1, ts, C), lambda b, t: (b, t, 0)),
                   pl.BlockSpec((1, ts, Cout), lambda b, t: (b, t, 0))),
        scratch_shapes=[pltpu.VMEM((rp, ts), jnp.float32),
                        pltpu.VMEM((rde, ts), jnp.float32)],
        compiler_params=pltpu.CompilerParams(
            dimension_semantics=("parallel", "parallel"),
            vmem_limit_bytes=32 * 1024 * 1024),
    )(cxy, p_flat)

    p_nhwc = p_nhwc_flat[:, :S, :].reshape(bs, nG, nG, C)
    p_de = de_flat[:, :S, :].reshape(bs, nG, nG, Cout)
    return p_nhwc, p_de


# --------------------------------------------------------------------------
# pure-JAX reference mirroring the PyTorch module exactly
# --------------------------------------------------------------------------
def head_ref(p, nC, stride):
    p = p.astype(jnp.float32)
    bs, C, nG, _ = p.shape
    pp = jnp.transpose(p, (0, 2, 3, 1))               # (bs, nG, nG, C)
    raw_l = pp[..., 0:4]
    raw_s = pp[..., 4:8]
    raw_r = pp[..., 8:9]
    raw_conf = pp[..., 9:10]
    raw_prob = pp[..., 10:]

    y = jnp.repeat(jnp.arange(nG)[:, None], nG, axis=1)
    x = jnp.repeat(jnp.arange(nG)[None, :], nG, axis=0)
    grid_xy = jnp.stack([x, y], axis=-1).astype(jnp.float32)[None]
    grid_xy = jnp.broadcast_to(grid_xy, (bs, nG, nG, 2))

    l = jnp.exp(raw_l) * stride
    xmin = grid_xy[..., 0:1] * stride + stride / 2 - l[..., 3:4]
    ymin = grid_xy[..., 1:2] * stride + stride / 2 - l[..., 0:1]
    xmax = grid_xy[..., 0:1] * stride + stride / 2 + l[..., 1:2]
    ymax = grid_xy[..., 1:2] * stride + stride / 2 + l[..., 2:3]
    w = l[..., 1:2] + l[..., 3:4]
    h = l[..., 0:1] + l[..., 2:3]
    cxr = (xmax + xmin) / 2
    cyr = (ymax + ymin) / 2
    xywh = jnp.concatenate([cxr, cyr, w, h], axis=-1)

    s = (jnp.clip(jax.nn.sigmoid(raw_s), 0.01, 1.0) - 0.01) / (1 - 0.01)
    r = jnp.clip(raw_r + 3.0, 0.0, 6.0) / 6.0
    maskr = jnp.where(r > 0.9, 0.0, 1.0)
    s = s * maskr
    conf = jax.nn.sigmoid(raw_conf)
    prob = jax.nn.sigmoid(raw_prob)
    bbox = jnp.concatenate([xywh, s, r, l, conf, prob], axis=-1)
    return pp, bbox


if __name__ == "__main__":
    nC = 8
    stride = 8
    C = 4 + 5 + nC + 1            # 18

    key = jax.random.PRNGKey(0)
    k1, k2 = jax.random.split(key)

    # main test: bs=2, nG=16  (S=256 -> no padding, grid=(2,1))
    bs, nG = 2, 16
    x = jax.random.normal(k1, (bs, C, nG, nG), dtype=jnp.float32)
    fwd = jax.jit(functools.partial(head_forward, nC=nC, stride=stride))
    p_nhwc, p_de = jax.block_until_ready(fwd(x))

    p_exp, de_exp = head_ref(x, nC, stride)
    assert p_nhwc.shape == (bs, nG, nG, C)
    assert p_de.shape == (bs, nG, nG, C + 4)
    assert jnp.allclose(p_nhwc, p_exp, atol=1e-4, rtol=1e-5)
    assert jnp.allclose(p_de, de_exp, atol=1e-4, rtol=1e-5)

    # padded-path test: nG=10 (S=100 -> padded to 128 lanes, sliced back)
    bs2, nG2 = 1, 10
    x2 = jax.random.normal(k2, (bs2, C, nG2, nG2), dtype=jnp.float32)
    p2, de2 = jax.block_until_ready(head_forward(x2, nC, stride))
    p2_exp, de2_exp = head_ref(x2, nC, stride)
    assert p2.shape == (bs2, nG2, nG2, C)
    assert de2.shape == (bs2, nG2, nG2, C + 4)
    assert jnp.allclose(p2, p2_exp, atol=1e-4, rtol=1e-5)
    assert jnp.allclose(de2, de2_exp, atol=1e-4, rtol=1e-5)

    print("KERNEL_OK")
</pallas_src>

<mosaic_0001>
module attributes {stable_mosaic.version = 11 : i64} {
  func.func @_head_kernel(%arg0: i32, %arg1: i32, %arg2: memref<2x256xf32, #tpu.memory_space<vmem>>, %arg3: memref<1x18x256xf32, #tpu.memory_space<vmem>>, %arg4: memref<1x256x18xf32, #tpu.memory_space<vmem>>, %arg5: memref<1x256x22xf32, #tpu.memory_space<vmem>>, %arg6: memref<128x256xf32, #tpu.memory_space<vmem>>, %arg7: memref<128x256xf32, #tpu.memory_space<vmem>>) attributes {dimension_semantics = [#tpu.dimension_semantics<parallel>, #tpu.dimension_semantics<parallel>], iteration_bounds = array<i64: 2, 1>, scalar_prefetch = 0 : i64, scratch_operands = 2 : i64, tpu.core_type = #tpu.core_type<tc>, window_params = [{transform_indices = @transform_0, window_bounds = array<i64: 2, 256>}, {transform_indices = @transform_1, window_bounds = array<i64: 1, 18, 256>}, {transform_indices = @transform_2, window_bounds = array<i64: 1, 256, 18>}, {transform_indices = @transform_3, window_bounds = array<i64: 1, 256, 22>}]} {
    %c0 = arith.constant 0 : index
    %c0_0 = arith.constant 0 : index
    %0 = vector.load %arg2[%c0, %c0_0] : memref<2x256xf32, #tpu.memory_space<vmem>>, vector<1x256xf32>
    %c1 = arith.constant 1 : index
    %c0_1 = arith.constant 0 : index
    %1 = vector.load %arg2[%c1, %c0_1] : memref<2x256xf32, #tpu.memory_space<vmem>>, vector<1x256xf32>
    %c0_2 = arith.constant 0 : index
    %c0_3 = arith.constant 0 : index
    %c0_4 = arith.constant 0 : index
    %2 = vector.load %arg3[%c0_2, %c0_3, %c0_4] : memref<1x18x256xf32, #tpu.memory_space<vmem>>, vector<1x18x256xf32>
    %3 = vector.shape_cast %2 : vector<1x18x256xf32> to vector<18x256xf32>
    %c0_5 = arith.constant 0 : index
    %c0_6 = arith.constant 0 : index
    %4 = vector.load %arg6[%c0_5, %c0_6] : memref<128x256xf32, #tpu.memory_space<vmem>>, vector<18x256xf32>
    tpu.vector_store %arg6[%c0_5, %c0_6], %3 {strides = array<i32>} : memref<128x256xf32, #tpu.memory_space<vmem>>, vector<18x256xf32>,
    %c0_7 = arith.constant 0 : index
    %c0_8 = arith.constant 0 : index
    %5 = vector.load %arg6[%c0_7, %c0_8] : memref<128x256xf32, #tpu.memory_space<vmem>>, vector<128x256xf32>
    %6 = tpu.transpose %5, [1, 0] : vector<128x256xf32> -> vector<256x128xf32>
    %7 = vector.extract_strided_slice %6 {offsets = [0, 0], sizes = [256, 18], strides = [1, 1]} : vector<256x128xf32> to vector<256x18xf32>
    %c0_9 = arith.constant 0 : index
    %c0_10 = arith.constant 0 : index
    %c0_11 = arith.constant 0 : index
    %8 = vector.load %arg4[%c0_9, %c0_10, %c0_11] : memref<1x256x18xf32, #tpu.memory_space<vmem>>, vector<1x256x18xf32>
    %9 = vector.shape_cast %8 : vector<1x256x18xf32> to vector<256x18xf32>
    %10 = vector.shape_cast %7 : vector<256x18xf32> to vector<1x256x18xf32>
    tpu.vector_store %arg4[%c0_9, %c0_10, %c0_11], %10 {strides = array<i32>} : memref<1x256x18xf32, #tpu.memory_space<vmem>>, vector<1x256x18xf32>,
    %11 = vector.extract_strided_slice %3 {offsets = [0, 0], sizes = [4, 256], strides = [1, 1]} : vector<18x256xf32> to vector<4x256xf32>
    %12 = math.exp %11 : vector<4x256xf32>
    %cst = arith.constant 8.000000e+00 : f32
    %13 = vector.broadcast %cst : f32 to vector<4x256xf32>
    %14 = arith.mulf %12, %13 : vector<4x256xf32>
    %15 = vector.extract_strided_slice %14 {offsets = [3, 0], sizes = [1, 256], strides = [1, 1]} : vector<4x256xf32> to vector<1x256xf32>
    %16 = arith.subf %0, %15 : vector<1x256xf32>
    %17 = vector.extract_strided_slice %14 {offsets = [0, 0], sizes = [1, 256], strides = [1, 1]} : vector<4x256xf32> to vector<1x256xf32>
    %18 = arith.subf %1, %17 : vector<1x256xf32>
    %19 = vector.extract_strided_slice %14 {offsets = [1, 0], sizes = [1, 256], strides = [1, 1]} : vector<4x256xf32> to vector<1x256xf32>
    %20 = arith.addf %0, %19 : vector<1x256xf32>
    %21 = vector.extract_strided_slice %14 {offsets = [2, 0], sizes = [1, 256], strides = [1, 1]} : vector<4x256xf32> to vector<1x256xf32>
    %22 = arith.addf %1, %21 : vector<1x256xf32>
    %23 = vector.extract_strided_slice %3 {offsets = [4, 0], sizes = [14, 256], strides = [1, 1]} : vector<18x256xf32> to vector<14x256xf32>
    %24 = arith.negf %23 : vector<14x256xf32>
    %25 = math.exp %24 : vector<14x256xf32>
    %cst_12 = arith.constant 1.000000e+00 : f32
    %26 = vector.broadcast %cst_12 : f32 to vector<14x256xf32>
    %27 = arith.addf %26, %25 : vector<14x256xf32>
    %28 = arith.divf %26, %27 : vector<14x256xf32>
    %29 = vector.extract_strided_slice %28 {offsets = [0, 0], sizes = [4, 256], strides = [1, 1]} : vector<14x256xf32> to vector<4x256xf32>
    %cst_13 = arith.constant 0.00999999977 : f32
    %cst_14 = arith.constant 1.000000e+00 : f32
    %30 = vector.broadcast %cst_13 : f32 to vector<4x256xf32>
    %31 = arith.maximumf %30, %29 : vector<4x256xf32>
    %32 = vector.broadcast %cst_14 : f32 to vector<4x256xf32>
    %33 = arith.minimumf %32, %31 : vector<4x256xf32>
    %cst_15 = arith.constant 0.00999999977 : f32
    %34 = vector.broadcast %cst_15 : f32 to vector<4x256xf32>
    %35 = arith.subf %33, %34 : vector<4x256xf32>
    %cst_16 = arith.constant 1.01010096 : f32
    %36 = vector.broadcast %cst_16 : f32 to vector<4x256xf32>
    %37 = arith.mulf %35, %36 : vector<4x256xf32>
    %38 = vector.extract_strided_slice %3 {offsets = [8, 0], sizes = [1, 256], strides = [1, 1]} : vector<18x256xf32> to vector<1x256xf32>
    %cst_17 = arith.constant 3.000000e+00 : f32
    %39 = vector.broadcast %cst_17 : f32 to vector<1x256xf32>
    %40 = arith.addf %38, %39 : vector<1x256xf32>
    %cst_18 = arith.constant 0.000000e+00 : f32
    %cst_19 = arith.constant 6.000000e+00 : f32
    %41 = vector.broadcast %cst_18 : f32 to vector<1x256xf32>
    %42 = arith.maximumf %41, %40 : vector<1x256xf32>
    %43 = vector.broadcast %cst_19 : f32 to vector<1x256xf32>
    %44 = arith.minimumf %43, %42 : vector<1x256xf32>
    %cst_20 = arith.constant 0.166666672 : f32
    %45 = vector.broadcast %cst_20 : f32 to vector<1x256xf32>
    %46 = arith.mulf %44, %45 : vector<1x256xf32>
    %cst_21 = arith.constant 0.899999976 : f32
    %47 = vector.broadcast %cst_21 : f32 to vector<1x256xf32>
    %48 = arith.cmpf ogt, %46, %47 : vector<1x256xf32>
    %cst_22 = arith.constant 0.000000e+00 : f32
    %49 = vector.shape_cast %48 : vector<1x256xi1> to vector<1x256xi1>
    %50 = vector.broadcast %49 : vector<1x256xi1> to vector<4x256xi1>
    %51 = vector.broadcast %cst_22 : f32 to vector<4x256xf32>
    %52 = arith.select %50, %51, %37 : vector<4x256xi1>, vector<4x256xf32>
    %53 = arith.addf %20, %16 : vector<1x256xf32>
    %cst_23 = arith.constant 5.000000e-01 : f32
    %54 = vector.broadcast %cst_23 : f32 to vector<1x256xf32>
    %55 = arith.mulf %53, %54 : vector<1x256xf32>
    %c0_24 = arith.constant 0 : index
    %c0_25 = arith.constant 0 : index
    %56 = vector.load %arg7[%c0_24, %c0_25] : memref<128x256xf32, #tpu.memory_space<vmem>>, vector<1x256xf32>
    tpu.vector_store %arg7[%c0_24, %c0_25], %55 {strides = array<i32>} : memref<128x256xf32, #tpu.memory_space<vmem>>, vector<1x256xf32>,
    %57 = arith.addf %22, %18 : vector<1x256xf32>
    %cst_26 = arith.constant 5.000000e-01 : f32
    %58 = vector.broadcast %cst_26 : f32 to vector<1x256xf32>
    %59 = arith.mulf %57, %58 : vector<1x256xf32>
    %c1_27 = arith.constant 1 : index
    %c0_28 = arith.constant 0 : index
    %60 = vector.load %arg7[%c1_27, %c0_28] : memref<128x256xf32, #tpu.memory_space<vmem>>, vector<1x256xf32>
    tpu.vector_store %arg7[%c1_27, %c0_28], %59 {strides = array<i32>} : memref<128x256xf32, #tpu.memory_space<vmem>>, vector<1x256xf32>,
    %61 = vector.extract_strided_slice %14 {offsets = [1, 0], sizes = [1, 256], strides = [1, 1]} : vector<4x256xf32> to vector<1x256xf32>
    %62 = vector.extract_strided_slice %14 {offsets = [3, 0], sizes = [1, 256], strides = [1, 1]} : vector<4x256xf32> to vector<1x256xf32>
    %63 = arith.addf %61, %62 : vector<1x256xf32>
    %c2 = arith.constant 2 : index
    %c0_29 = arith.constant 0 : index
    %64 = vector.load %arg7[%c2, %c0_29] : memref<128x256xf32, #tpu.memory_space<vmem>>, vector<1x256xf32>
    tpu.vector_store %arg7[%c2, %c0_29], %63 {strides = array<i32>} : memref<128x256xf32, #tpu.memory_space<vmem>>, vector<1x256xf32>,
    %65 = vector.extract_strided_slice %14 {offsets = [0, 0], sizes = [1, 256], strides = [1, 1]} : vector<4x256xf32> to vector<1x256xf32>
    %66 = vector.extract_strided_slice %14 {offsets = [2, 0], sizes = [1, 256], strides = [1, 1]} : vector<4x256xf32> to vector<1x256xf32>
    %67 = arith.addf %65, %66 : vector<1x256xf32>
    %c3 = arith.constant 3 : index
    %c0_30 = arith.constant 0 : index
    %68 = vector.load %arg7[%c3, %c0_30] : memref<128x256xf32, #tpu.memory_space<vmem>>, vector<1x256xf32>
    tpu.vector_store %arg7[%c3, %c0_30], %67 {strides = array<i32>} : memref<128x256xf32, #tpu.memory_space<vmem>>, vector<1x256xf32>,
    %c4 = arith.constant 4 : index
    %c0_31 = arith.constant 0 : index
    %69 = vector.load %arg7[%c4, %c0_31] : memref<128x256xf32, #tpu.memory_space<vmem>>, vector<4x256xf32>
    tpu.vector_store %arg7[%c4, %c0_31], %52 {strides = array<i32>} : memref<128x256xf32, #tpu.memory_space<vmem>>, vector<4x256xf32>,
    %c8 = arith.constant 8 : index
    %c0_32 = arith.constant 0 : index
    %70 = vector.load %arg7[%c8, %c0_32] : memref<128x256xf32, #tpu.memory_space<vmem>>, vector<1x256xf32>
    tpu.vector_store %arg7[%c8, %c0_32], %46 {strides = array<i32>} : memref<128x256xf32, #tpu.memory_space<vmem>>, vector<1x256xf32>,
    %c9 = arith.constant 9 : index
    %c0_33 = arith.constant 0 : index
    %71 = vector.load %arg7[%c9, %c0_33] : memref<128x256xf32, #tpu.memory_space<vmem>>, vector<4x256xf32>
    tpu.vector_store %arg7[%c9, %c0_33], %14 {strides = array<i32>} : memref<128x256xf32, #tpu.memory_space<vmem>>, vector<4x256xf32>,
    %72 = vector.extract_strided_slice %28 {offsets = [5, 0], sizes = [9, 256], strides = [1, 1]} : vector<14x256xf32> to vector<9x256xf32>
    %c13 = arith.constant 13 : index
    %c0_34 = arith.constant 0 : index
    %73 = vector.load %arg7[%c13, %c0_34] : memref<128x256xf32, #tpu.memory_space<vmem>>, vector<9x256xf32>
    tpu.vector_store %arg7[%c13, %c0_34], %72 {strides = array<i32>} : memref<128x256xf32, #tpu.memory_space<vmem>>, vector<9x256xf32>,
    %c0_35 = arith.constant 0 : index
    %c0_36 = arith.constant 0 : index
    %74 = vector.load %arg7[%c0_35, %c0_36] : memref<128x256xf32, #tpu.memory_space<vmem>>, vector<128x256xf32>
    %75 = tpu.transpose %74, [1, 0] : vector<128x256xf32> -> vector<256x128xf32>
    %76 = vector.extract_strided_slice %75 {offsets = [0, 0], sizes = [256, 22], strides = [1, 1]} : vector<256x128xf32> to vector<256x22xf32>
    %c0_37 = arith.constant 0 : index
    %c0_38 = arith.constant 0 : index
    %c0_39 = arith.constant 0 : index
    %77 = vector.load %arg5[%c0_37, %c0_38, %c0_39] : memref<1x256x22xf32, #tpu.memory_space<vmem>>, vector<1x256x22xf32>
    %78 = vector.shape_cast %77 : vector<1x256x22xf32> to vector<256x22xf32>
    %79 = vector.shape_cast %76 : vector<256x22xf32> to vector<1x256x22xf32>
    tpu.vector_store %arg5[%c0_37, %c0_38, %c0_39], %79 {strides = array<i32>} : memref<1x256x22xf32, #tpu.memory_space<vmem>>, vector<1x256x22xf32>,
    return
  }
  func.func @transform_0(%arg0: i32, %arg1: i32) -> (i32, i32) {
    %c0_i32 = arith.constant 0 : i32
    %c0_i32_0 = arith.constant 0 : i32
    return %c0_i32, %arg1 : i32, i32
  }
  func.func @transform_1(%arg0: i32, %arg1: i32) -> (i32, i32, i32) {
    %c0_i32 = arith.constant 0 : i32
    %c0_i32_0 = arith.constant 0 : i32
    return %arg0, %c0_i32, %arg1 : i32, i32, i32
  }
  func.func @transform_2(%arg0: i32, %arg1: i32) -> (i32, i32, i32) {
    %c0_i32 = arith.constant 0 : i32
    %c0_i32_0 = arith.constant 0 : i32
    return %arg0, %arg1, %c0_i32 : i32, i32, i32
  }
  func.func @transform_3(%arg0: i32, %arg1: i32) -> (i32, i32, i32) {
    %c0_i32 = arith.constant 0 : i32
    %c0_i32_0 = arith.constant 0 : i32
    return %arg0, %arg1, %c0_i32 : i32, i32, i32
  }
}

</mosaic_0001>

<llo_original>
// kernel: head_forward.1
$region0: #{head_forward.1}
  #allocation0 [shape = 'u32[]', space=smem, size = 0x4, offset = 0x4, fixed_abs, tag = 'smem constant byte address 0x4 - core index']
  #allocation1 [shape = 'u32[144,128]{1,0:T(1,128)}', space=vmem, size = 0x12000, scoped, tag = 'internal scratch']
  #allocation2 [shape = 'f32[128,256]{1,0:T(8,128)}', space=vmem, size = 0x20000, scoped, tag = 'scratch operand']
  #allocation3 [shape = 'f32[128,256]{1,0:T(8,128)}', space=vmem, size = 0x20000, scoped, tag = 'scratch operand']
  %s0 = inlined_call_operand.vmem [shape: f32[2,256], index: 0, kind: input, shape index: {}]
  %s1 = inlined_call_operand.vmem [shape: f32[2,18,256], index: 1, kind: input, shape index: {}]
  %s2 = inlined_call_operand.hbm [shape: f32[2,256,18], index: 2, kind: output, shape index: {0}]
  %s3 = inlined_call_operand.hbm [shape: f32[2,256,22], index: 3, kind: output, shape index: {1}]
  %4 = xla_tuple %s2, %s3
  %s5 = sld [smem:[#allocation0]]
  $region49: #{head_forward.1} parent=0
    _
  %s7 = ssub.s32 1, %s5
  %s8 = scalar_select 0, %s7, %s5
  $region1: #{head_forward.1} parent=0
    #allocation4 [shape = 'u8[262144]{0}', space=vmem, size = 0x40000, scoped, tag = 'output window, operand 0']
    #allocation5 [shape = 's32[2]{0}', space=sflag, size = 0x8, scoped, tag = 'scoped memory for head_forward.1']
    #allocation6 [shape = 'u8[262144]{0}', space=vmem, size = 0x40000, scoped, tag = 'output window, operand 1']
    #allocation7 [shape = 's32[2]{0}', space=sflag, size = 0x8, scoped, tag = 'scoped memory for head_forward.1']
    %9 = vsyncpa [#allocation5], 0
    %s10 = scalar_lea.sflag [#allocation5], 1
    %11 = vsyncpa %s10, 0
    %12 = vsyncpa [#allocation7], 0
    %s13 = scalar_lea.sflag [#allocation7], 1
    %14 = vsyncpa %s13, 0
    loop: start=0, step=1, limit=4
    $region2: #{head_forward.1} parent=1 // loop_pre_header
      _
    $region3: #{head_forward.1} parent=1 // loop_header
      %s16 = sphi 0, %s20
      %p17 = scmp.ge.s32.totalorder %s16, 4
      %s23 = sphi 0, %s35
      %s24 = sphi 0, %s31
      %s25 = sphi 0, %s23
      %s26 = sphi 0, %s24
      %s27 = sphi 0, %s25
      %s28 = sphi 0, %s26
      %s38 = sphi 0, %s40
      %s41 = sphi 0, %s38
      %s42 = sphi 0, %s41
      %s58 = sphi 0, %s42
      %s66 = sphi 0, %s68
      %s69 = sphi 0, %s66
      %s70 = sphi 0, %s69
      %s86 = sphi 0, %s70
      %s94 = sphi 0, %s96
      %s97 = sphi 0, %s94
      %s98 = sphi 0, %s97
      %s114 = sphi 0, %s98
      %s122 = sphi 0, %s124
      %s125 = sphi 0, %s122
      %s126 = sphi 0, %s125
      %s142 = sphi 0, %s126
    $region4: #{head_forward.1} parent=1 // loop_header_branch
      %19 = sbr.rel (%p17) target = $region8
    $region5: #{head_forward.1} parent=1 // loop_body
      %s21 = ssub.s32 %s16, 1
      %s22 = ssub.s32 %s16, 2
      %s29 = sadd.s32 1, %s24
      %p30 = scmp.ge.s32.totalorder %s29, 1
      %s31 = scalar_select %p30, 0, %s29
      %s32 = sadd.s32 1, %s23
      %s33 = scalar_select %p30, %s32, %s23
      %p34 = scmp.ge.s32.totalorder %s33, 2
      %s35 = scalar_select %p34, 0, %s33
      %s36 = ssub.s32 %s24, %s31
      %p37 = scmp.eq.s32.totalorder %s36, 0
      %s39 = sadd.s32 %s38, 1
      %s40 = scalar_select %p37, %s38, %s39
      %p43 = pneg %p37
      %p44 = scmp.eq.s32.totalorder %s16, 1
      %p45 = por %p43, %p44
      %p46 = scmp.ne.s32.totalorder %s38, %s41
      %p47 = scmp.eq.s32.totalorder %s16, 0
      %p48 = por %p46, %p47
      %p49 = scmp.ne.s32.totalorder %s38, %s41
      %p50 = scmp.eq.s32.totalorder %s21, 1
      %p51 = por %p49, %p50
      %p52 = scmp.ne.s32.totalorder %s41, %s42
      %p53 = scmp.eq.s32.totalorder %s21, 0
      %p54 = por %p52, %p53
      %p55 = scmp.ne.s32.totalorder %s41, %s42
      %p56 = scmp.eq.s32.totalorder %s22, 1
      %p57 = por %p55, %p56
      %p59 = scmp.ne.s32.totalorder %s42, %s58
      %p60 = scmp.eq.s32.totalorder %s22, 0
      %p61 = por %p59, %p60
      %s62 = ssub.s32 %s23, %s35
      %s63 = ssub.s32 %s24, %s31
      %s64 = sor.u32 %s62, %s63
      %p65 = scmp.eq.s32.totalorder %s64, 0
      %s67 = sadd.s32 %s66, 1
      %s68 = scalar_select %p65, %s66, %s67
      %p71 = pneg %p65
      %p72 = scmp.eq.s32.totalorder %s16, 1
      %p73 = por %p71, %p72
      %p74 = scmp.ne.s32.totalorder %s66, %s69
      %p75 = scmp.eq.s32.totalorder %s16, 0
      %p76 = por %p74, %p75
      %p77 = scmp.ne.s32.totalorder %s66, %s69
      %p78 = scmp.eq.s32.totalorder %s21, 1
      %p79 = por %p77, %p78
      %p80 = scmp.ne.s32.totalorder %s69, %s70
      %p81 = scmp.eq.s32.totalorder %s21, 0
      %p82 = por %p80, %p81
      %p83 = scmp.ne.s32.totalorder %s69, %s70
      %p84 = scmp.eq.s32.totalorder %s22, 1
      %p85 = por %p83, %p84
      %p87 = scmp.ne.s32.totalorder %s70, %s86
      %p88 = scmp.eq.s32.totalorder %s22, 0
      %p89 = por %p87, %p88
      %s90 = ssub.s32 %s23, %s35
      %s91 = ssub.s32 %s24, %s31
      %s92 = sor.u32 %s90, %s91
      %p93 = scmp.eq.s32.totalorder %s92, 0
      %s95 = sadd.s32 %s94, 1
      %s96 = scalar_select %p93, %s94, %s95
      %p99 = pneg %p93
      %p100 = scmp.eq.s32.totalorder %s16, 1
      %p101 = por %p99, %p100
      %p102 = scmp.ne.s32.totalorder %s94, %s97
      %p103 = scmp.eq.s32.totalorder %s16, 0
      %p104 = por %p102, %p103
      %p105 = scmp.ne.s32.totalorder %s94, %s97
      %p106 = scmp.eq.s32.totalorder %s21, 1
      %p107 = por %p105, %p106
      %p108 = scmp.ne.s32.totalorder %s97, %s98
      %p109 = scmp.eq.s32.totalorder %s21, 0
      %p110 = por %p108, %p109
      %p111 = scmp.ne.s32.totalorder %s97, %s98
      %p112 = scmp.eq.s32.totalorder %s22, 1
      %p113 = por %p111, %p112
      %p115 = scmp.ne.s32.totalorder %s98, %s114
      %p116 = scmp.eq.s32.totalorder %s22, 0
      %p117 = por %p115, %p116
      %s118 = ssub.s32 %s23, %s35
      %s119 = ssub.s32 %s24, %s31
      %s120 = sor.u32 %s118, %s119
      %p121 = scmp.eq.s32.totalorder %s120, 0
      %s123 = sadd.s32 %s122, 1
      %s124 = scalar_select %p121, %s122, %s123
      %p127 = pneg %p121
      %p128 = scmp.eq.s32.totalorder %s16, 1
      %p129 = por %p127, %p128
      %p130 = scmp.ne.s32.totalorder %s122, %s125
      %p131 = scmp.eq.s32.totalorder %s16, 0
      %p132 = por %p130, %p131
      %p133 = scmp.ne.s32.totalorder %s122, %s125
      %p134 = scmp.eq.s32.totalorder %s21, 1
      %p135 = por %p133, %p134
      %p136 = scmp.ne.s32.totalorder %s125, %s126
      %p137 = scmp.eq.s32.totalorder %s21, 0
      %p138 = por %p136, %p137
      %p139 = scmp.ne.s32.totalorder %s125, %s126
      %p140 = scmp.eq.s32.totalorder %s22, 1
      %p141 = por %p139, %p140
      %p143 = scmp.ne.s32.totalorder %s126, %s142
      %p144 = scmp.eq.s32.totalorder %s22, 0
      %p145 = por %p143, %p144
      %p146 = scmp.le.s32.totalorder 1, %s16
      %p147 = scmp.lt.s32.totalorder %s16, 3
      %p148 = pnand %p146, %p147
      %p149 = pneg %p148
      // Predicated region
      $region9: #{head_forward.1} parent=5 // pred_check
        _
      $region10: #{head_forward.1} parent=5 // pred_check_branch
        %151 = sbr.rel (%p148) target = $region12
      $region11: #{head_forward.1} parent=5 // pred_region
        %s152 = ssub.s32 %s16, 1
        // Predicated region
        $region13: #{head_forward.1} parent=11 // pred_check
          %p153 = pneg %p54
        $region14: #{head_forward.1} parent=11 // pred_check_branch
          %155 = sbr.rel (%p153) target = $region16
        $region15: #{head_forward.1} parent=11 // pred_region
          %s156 = smul.u32 2, %s26
          %p157 = scmp.lt.s32.totalorder %s156, 1
          %s158 = scalar_select %p157, %s156, 1
          %s159 = smul.addr %s158, 2
          %s160 = scalar_lea.vmem %s0, %s159
          %s161 = smul.u32 2, %s26
        $region16: #{head_forward.1} parent=11 // pred_fallthru
          _
      $region12: #{head_forward.1} parent=5 // pred_fallthru
        _
      %p162 = scmp.lt.s32.totalorder %s16, 2
      // Predicated region
      $region17: #{head_forward.1} parent=5 // pred_check
        %p163 = pneg %p162
      $region18: #{head_forward.1} parent=5 // pred_check_branch
        %165 = sbr.rel (%p163) target = $region20
      $region19: #{head_forward.1} parent=5 // pred_region
        // Predicated region
        $region21: #{head_forward.1} parent=19 // pred_check
          %p166 = pneg %p76
        $region22: #{head_forward.1} parent=19 // pred_check_branch
          %168 = sbr.rel (%p166) target = $region24
        $region23: #{head_forward.1} parent=19 // pred_region
          %s169 = smul.u32 2, %s24
          %p170 = scmp.lt.s32.totalorder %s23, 1
          %s171 = scalar_select %p170, %s23, 1
          %p172 = scmp.lt.s32.totalorder %s169, 1
          %s173 = scalar_select %p172, %s169, 1
          %s174 = smul.addr %s171, 6
          %s175 = sadd.s32 %s173, %s174
          %s176 = smul.addr %s175, 8
          %s177 = scalar_lea.vmem %s1, %s176
          %s178 = smul.u32 2, %s24
        $region24: #{head_forward.1} parent=19 // pred_fallthru
          _
      $region20: #{head_forward.1} parent=5 // pred_fallthru
        _
      %p179 = scmp.le.s32.totalorder 1, %s16
      %p180 = scmp.lt.s32.totalorder %s16, 3
      %p181 = pnand %p179, %p180
      %p182 = pneg %p181
      // Predicated region
      $region25: #{head_forward.1} parent=5 // pred_check
        _
      $region26: #{head_forward.1} parent=5 // pred_check_branch
        %184 = sbr.rel (%p181) target = $region28
      $region27: #{head_forward.1} parent=5 // pred_region
        %s185 = ssub.s32 %s16, 1
        %s186 = smul.u32 2, %s26
        %p187 = scmp.lt.s32.totalorder %s186, 1
        %s188 = scalar_select %p187, %s186, 1
        %s189 = smul.addr %s188, 2
        %s190 = scalar_lea.vmem %s0, %s189
        %p191 = pneg %p54
        %p192 = pneg %p51
        %s193 = smul.u32 2, %s26
        %p194 = scmp.lt.s32.totalorder %s25, 1
        %s195 = scalar_select %p194, %s25, 1
        %p196 = scmp.lt.s32.totalorder %s193, 1
        %s197 = scalar_select %p196, %s193, 1
        %s198 = smul.addr %s195, 6
        %s199 = sadd.s32 %s197, %s198
        %s200 = smul.addr %s199, 8
        %s201 = scalar_lea.vmem %s1, %s200
        %p202 = pneg %p82
        %p203 = pneg %p79
        %p204 = pneg %p110
        %p205 = pneg %p107
        %s206 = sand.u32 %s97, 1
        %s207 = scalar_lea.sflag [#allocation5], %s206
        %s208 = sand.u32 %s97, 1
        %s209 = smul.addr %s208, 256
        %s210 = scalar_lea.vmem [#allocation4], %s209
        %p211 = pneg %p138
        %p212 = pneg %p135
        %s213 = sand.u32 %s125, 1
        %s214 = scalar_lea.sflag [#allocation7], %s213
        %s215 = sand.u32 %s125, 1
        %s216 = smul.addr %s215, 256
        %s217 = scalar_lea.vmem [#allocation6], %s216
        %s218 = smul.u32 2, %s26
        %p219 = scmp.lt.s32.totalorder %s218, 1
        %s220 = scalar_select %p219, %s218, 1
        %s221 = smul.addr %s220, 2
        %s222 = scalar_lea.vmem %s0, %s221
        %s223 = smul.u32 2, %s26
        %s224 = smul.u32 2, %s26
        %p225 = scmp.lt.s32.totalorder %s25, 1
        %s226 = scalar_select %p225, %s25, 1
        %p227 = scmp.lt.s32.totalorder %s224, 1
        %s228 = scalar_select %p227, %s224, 1
        %s229 = smul.addr %s226, 6
        %s230 = sadd.s32 %s228, %s229
        %s231 = smul.addr %s230, 8
        %s232 = scalar_lea.vmem %s1, %s231
        %s233 = smul.u32 2, %s26
        %s234 = smul.u32 32, %s26
        %s235 = smul.u32 32, %s26
        %v236 = vld [vmem:[%s222] ss:$2 sm:$0x3]
        %s237 = scalar_lea.vmem %s222, 1
        %v238 = vld [vmem:[%s237] ss:$2 sm:$0x3]
        %v239 = vld [vmem:[%s232] sm:$0xff]
        %v240 = vld [vmem:[%s232 + $0x8] sm:$0xff]
        %v241 = vld [vmem:[%s232 + $0x10] sm:$0xff]
        %v242 = vld [vmem:[%s232 + $0x18] sm:$0xff]
        %v243 = vld [vmem:[%s232 + $0x20] sm:$0x3]
        %v244 = vld [vmem:[%s232 + $0x28] sm:$0x3]
        %245 = vst [vmem:[#allocation2] sm:$0xff] %v239
        %246 = vst [vmem:[#allocation2 + $0x8] sm:$0xff] %v240
        %247 = vst [vmem:[#allocation2 + $0x10] sm:$0xff] %v241
        %248 = vst [vmem:[#allocation2 + $0x18] sm:$0xff] %v242
        %249 = vst [vmem:[#allocation2 + $0x20] sm:$0x3] %v243
        %250 = vst [vmem:[#allocation2 + $0x28] sm:$0x3] %v244
        %v251 = vld [vmem:[#allocation2] sm:$0xff]
        %v252 = vld [vmem:[#allocation2 + $0x8] sm:$0xff]
        %v253 = vld [vmem:[#allocation2 + $0x10] sm:$0xff]
        %v254 = vld [vmem:[#allocation2 + $0x18] sm:$0xff]
        %v255 = vld [vmem:[#allocation2 + $0x20] sm:$0xff]
        %v256 = vld [vmem:[#allocation2 + $0x28] sm:$0xff]
        %v257 = vld [vmem:[#allocation2 + $0x30] sm:$0xff]
        %v258 = vld [vmem:[#allocation2 + $0x38] sm:$0xff]
        %v259 = vld [vmem:[#allocation2 + $0x40] sm:$0xff]
        %v260 = vld [vmem:[#allocation2 + $0x48] sm:$0xff]
        %v261 = vld [vmem:[#allocation2 + $0x50] sm:$0xff]
        %v262 = vld [vmem:[#allocation2 + $0x58] sm:$0xff]
        %v263 = vld [vmem:[#allocation2 + $0x60] sm:$0xff]
        %v264 = vld [vmem:[#allocation2 + $0x68] sm:$0xff]
        %v265 = vld [vmem:[#allocation2 + $0x70] sm:$0xff]
        %v266 = vld [vmem:[#allocation2 + $0x78] sm:$0xff]
        %v267 = vld [vmem:[#allocation2 + $0x80] sm:$0xff]
        %v268 = vld [vmem:[#allocation2 + $0x88] sm:$0xff]
        %v269 = vld [vmem:[#allocation2 + $0x90] sm:$0xff]
        %v270 = vld [vmem:[#allocation2 + $0x98] sm:$0xff]
        %v271 = vld [vmem:[#allocation2 + $0xa0] sm:$0xff]
        %v272 = vld [vmem:[#allocation2 + $0xa8] sm:$0xff]
        %v273 = vld [vmem:[#allocation2 + $0xb0] sm:$0xff]
        %v274 = vld [vmem:[#allocation2 + $0xb8] sm:$0xff]
        %v275 = vld [vmem:[#allocation2 + $0xc0] sm:$0xff]
        %v276 = vld [vmem:[#allocation2 + $0xc8] sm:$0xff]
        %v277 = vld [vmem:[#allocation2 + $0xd0] sm:$0xff]
        %v278 = vld [vmem:[#allocation2 + $0xd8] sm:$0xff]
        %v279 = vld [vmem:[#allocation2 + $0xe0] sm:$0xff]
        %v280 = vld [vmem:[#allocation2 + $0xe8] sm:$0xff]
        %v281 = vld [vmem:[#allocation2 + $0xf0] sm:$0xff]
        %v282 = vld [vmem:[#allocation2 + $0xf8] sm:$0xff]
        %283 = vxpose.xlu0.b32.start [1/16] %v251, 128
        %284 = vxpose.xlu0.b32.cont [2/16] %v253, 128
        %285 = vxpose.xlu0.b32.cont [3/16] %v255, 128
        %286 = vxpose.xlu0.b32.cont [4/16] %v257, 128
        %287 = vxpose.xlu0.b32.cont [5/16] %v259, 128
        %288 = vxpose.xlu0.b32.cont [6/16] %v261, 128
        %289 = vxpose.xlu0.b32.cont [7/16] %v263, 128
        %290 = vxpose.xlu0.b32.cont [8/16] %v265, 128
        %291 = vxpose.xlu0.b32.cont [9/16] %v267, 128
        %292 = vxpose.xlu0.b32.cont [10/16] %v269, 128
        %293 = vxpose.xlu0.b32.cont [11/16] %v271, 128
        %294 = vxpose.xlu0.b32.cont [12/16] %v273, 128
        %295 = vxpose.xlu0.b32.cont [13/16] %v275, 128
        %296 = vxpose.xlu0.b32.cont [14/16] %v277, 128
        %297 = vxpose.xlu0.b32.cont [15/16] %v279, 128
        %298 = vxpose.xlu0.b32.end [16/16] %v281, 128
        %v299 = vpop.trf.xlu0
        %v300 = vpop.trf.xlu0
        %v301 = vpop.trf.xlu0
        %v302 = vpop.trf.xlu0
        %v303 = vpop.trf.xlu0
        %v304 = vpop.trf.xlu0
        %v305 = vpop.trf.xlu0
        %v306 = vpop.trf.xlu0
        %v307 = vpop.trf.xlu0
        %v308 = vpop.trf.xlu0
        %v309 = vpop.trf.xlu0
        %v310 = vpop.trf.xlu0
        %v311 = vpop.trf.xlu0
        %v312 = vpop.trf.xlu0
        %v313 = vpop.trf.xlu0
        %v314 = vpop.trf.xlu0
        %315 = vxpose.xlu0.b32.start [1/16] %v252, 128
        %316 = vxpose.xlu0.b32.cont [2/16] %v254, 128
        %317 = vxpose.xlu0.b32.cont [3/16] %v256, 128
        %318 = vxpose.xlu0.b32.cont [4/16] %v258, 128
        %319 = vxpose.xlu0.b32.cont [5/16] %v260, 128
        %320 = vxpose.xlu0.b32.cont [6/16] %v262, 128
        %321 = vxpose.xlu0.b32.cont [7/16] %v264, 128
        %322 = vxpose.xlu0.b32.cont [8/16] %v266, 128
        %323 = vxpose.xlu0.b32.cont [9/16] %v268, 128
        %324 = vxpose.xlu0.b32.cont [10/16] %v270, 128
        %325 = vxpose.xlu0.b32.cont [11/16] %v272, 128
        %326 = vxpose.xlu0.b32.cont [12/16] %v274, 128
        %327 = vxpose.xlu0.b32.cont [13/16] %v276, 128
        %328 = vxpose.xlu0.b32.cont [14/16] %v278, 128
        %329 = vxpose.xlu0.b32.cont [15/16] %v280, 128
        %330 = vxpose.xlu0.b32.end [16/16] %v282, 128
        %v331 = vpop.trf.xlu0
        %v332 = vpop.trf.xlu0
        %v333 = vpop.trf.xlu0
        %v334 = vpop.trf.xlu0
        %v335 = vpop.trf.xlu0
        %v336 = vpop.trf.xlu0
        %v337 = vpop.trf.xlu0
        %v338 = vpop.trf.xlu0
        %v339 = vpop.trf.xlu0
        %v340 = vpop.trf.xlu0
        %v341 = vpop.trf.xlu0
        %v342 = vpop.trf.xlu0
        %v343 = vpop.trf.xlu0
        %v344 = vpop.trf.xlu0
        %v345 = vpop.trf.xlu0
        %v346 = vpop.trf.xlu0
        %vm347 = vcmask 146432
        %348 = vst.msk [vmem:[%s210] sm:$0xff] %vm347, %v299
        %349 = vst.msk [vmem:[%s210 + $0x8] sm:$0xff] %vm347, %v300
        %350 = vst.msk [vmem:[%s210 + $0x10] sm:$0xff] %vm347, %v301
        %351 = vst.msk [vmem:[%s210 + $0x18] sm:$0xff] %vm347, %v302
        %352 = vst.msk [vmem:[%s210 + $0x20] sm:$0xff] %vm347, %v303
        %353 = vst.msk [vmem:[%s210 + $0x28] sm:$0xff] %vm347, %v304
        %354 = vst.msk [vmem:[%s210 + $0x30] sm:$0xff] %vm347, %v305
        %355 = vst.msk [vmem:[%s210 + $0x38] sm:$0xff] %vm347, %v306
        %356 = vst.msk [vmem:[%s210 + $0x40] sm:$0xff] %vm347, %v307
        %357 = vst.msk [vmem:[%s210 + $0x48] sm:$0xff] %vm347, %v308
        %358 = vst.msk [vmem:[%s210 + $0x50] sm:$0xff] %vm347, %v309
        %359 = vst.msk [vmem:[%s210 + $0x58] sm:$0xff] %vm347, %v310
        %360 = vst.msk [vmem:[%s210 + $0x60] sm:$0xff] %vm347, %v311
        %361 = vst.msk [vmem:[%s210 + $0x68] sm:$0xff] %vm347, %v312
        %362 = vst.msk [vmem:[%s210 + $0x70] sm:$0xff] %vm347, %v313
        %363 = vst.msk [vmem:[%s210 + $0x78] sm:$0xff] %vm347, %v314
        %364 = vst.msk [vmem:[%s210 + $0x80] sm:$0xff] %vm347, %v331
        %365 = vst.msk [vmem:[%s210 + $0x88] sm:$0xff] %vm347, %v332
        %366 = vst.msk [vmem:[%s210 + $0x90] sm:$0xff] %vm347, %v333
        %367 = vst.msk [vmem:[%s210 + $0x98] sm:$0xff] %vm347, %v334
        %368 = vst.msk [vmem:[%s210 + $0xa0] sm:$0xff] %vm347, %v335
        %369 = vst.msk [vmem:[%s210 + $0xa8] sm:$0xff] %vm347, %v336
        %370 = vst.msk [vmem:[%s210 + $0xb0] sm:$0xff] %vm347, %v337
        %371 = vst.msk [vmem:[%s210 + $0xb8] sm:$0xff] %vm347, %v338
        %372 = vst.msk [vmem:[%s210 + $0xc0] sm:$0xff] %vm347, %v339
        %373 = vst.msk [vmem:[%s210 + $0xc8] sm:$0xff] %vm347, %v340
        %374 = vst.msk [vmem:[%s210 + $0xd0] sm:$0xff] %vm347, %v341
        %375 = vst.msk [vmem:[%s210 + $0xd8] sm:$0xff] %vm347, %v342
        %376 = vst.msk [vmem:[%s210 + $0xe0] sm:$0xff] %vm347, %v343
        %377 = vst.msk [vmem:[%s210 + $0xe8] sm:$0xff] %vm347, %v344
        %378 = vst.msk [vmem:[%s210 + $0xf0] sm:$0xff] %vm347, %v345
        %379 = vst.msk [vmem:[%s210 + $0xf8] sm:$0xff] %vm347, %v346
        %v380 = vmul.f32 %v239, 1.442695
        %v381 = vpow.pop %v380
        %v382 = vmul.f32 %v240, 1.442695
        %v383 = vpow.pop %v382
        %v384 = vmul.f32 %v381, 8.0
        %v385 = vmul.f32 %v383, 8.0
        %v388 = vcombine.low %v384, %v385
        %v390 = vunpack.c.l.s4 1966171168
        %v391 = vunpack.c.0.s8 %v390
        %v392 = vlaneseq
        %v393 = vshrl.u32 %v392, 7
        %v394 = vsub.s32 %v391, %v393
        %v395 = vrot.slane %v388, %v394
        %v396 = vcombine.high %v395, %v395
        %v398 = vunpack.c.l.s4 1966171168
        %v399 = vunpack.c.0.s8 %v398
        %v400 = vlaneseq
        %v401 = vshrl.u32 %v400, 7
        %v402 = vsub.s32 %v399, %v401
        %v403 = vrot.slane %v396, %v402
        %v404 = vcombine.high %v403, %v403
        %v406 = vsub.f32 %v236, %v404
        %v408 = vunpack.c.l.s4 1966171168
        %v409 = vunpack.c.0.s8 %v408
        %v410 = vlaneseq
        %v411 = vshrl.u32 %v410, 7
        %v412 = vsub.s32 %v409, %v411
        %v413 = vrot.slane %v395, %v412
        %v415 = vsub.f32 %v238, %v413
        %v417 = vadd.f32 %v236, %v403
        %v418 = vcombine.high %v413, %v413
        %v420 = vadd.f32 %v238, %v418
        %v421 = vxor.u32 %v239, 2147483648
        %v422 = vxor.u32 %v240, 2147483648
        %v423 = vxor.u32 %v241, 2147483648
        %v424 = vxor.u32 %v242, 2147483648
        %v425 = vxor.u32 %v243, 2147483648
        %v426 = vxor.u32 %v244, 2147483648
        %v427 = vmul.f32 %v421, 1.442695
        %v428 = vpow.pop %v427
        %v429 = vmul.f32 %v422, 1.442695
        %v430 = vpow.pop %v429
        %v431 = vmul.f32 %v423, 1.442695
        %v432 = vpow.pop %v431
        %v433 = vmul.f32 %v424, 1.442695
        %v434 = vpow.pop %v433
        %v435 = vmul.f32 %v425, 1.442695
        %v436 = vpow.pop %v435
        %v437 = vmul.f32 %v426, 1.442695
        %v438 = vpow.pop %v437
        %v439 = vadd.f32 %v428, 1.0
        %v440 = vadd.f32 %v430, 1.0
        %v441 = vadd.f32 %v432, 1.0
        %v442 = vadd.f32 %v434, 1.0
        %v443 = vadd.f32 %v436, 1.0
        %v444 = vadd.f32 %v438, 1.0
        %v445 = vrcp.pop %v439
        %v446 = vmul.f32 1.0, %v445
        %v447 = vrcp.pop %v440
        %v448 = vmul.f32 1.0, %v447
        %v449 = vrcp.pop %v441
        %v450 = vmul.f32 1.0, %v449
        %v451 = vrcp.pop %v442
        %v452 = vmul.f32 1.0, %v451
        %v453 = vrcp.pop %v443
        %v454 = vmul.f32 1.0, %v453
        %v455 = vrcp.pop %v444
        %v456 = vmul.f32 1.0, %v455
        %v457 = vmax.f32 %v446, 0.01
        %v458 = vmax.f32 %v448, 0.01
        %v459 = vmin.f32 %v457, 1.0
        %v460 = vmin.f32 %v458, 1.0
        %v461 = vsub.f32 %v459, 0.01
        %v462 = vsub.f32 %v460, 0.01
        %v463 = vmul.f32 %v461, 1.010101
        %v464 = vmul.f32 %v462, 1.010101
        %v465 = vadd.f32 %v241, 3.0
        %v466 = vadd.f32 %v242, 3.0
        %v467 = vmax.f32 %v465, 0.0
        %v468 = vmax.f32 %v466, 0.0
        %v469 = vmin.f32 %v467, 6.0
        %v470 = vmin.f32 %v468, 6.0
        %v471 = vmul.f32 %v469, 0.16666667
        %v472 = vmul.f32 %v470, 0.16666667
        %vm473 = vcmp.gt.f32.partialorder %v471, 0.9
        %vm474 = vcmp.gt.f32.partialorder %v472, 0.9
        %v475 = vsel %vm473, 1, 0
        %v476 = vsel %vm474, 1, 0
        %v477 = vlaneseq
        %v478 = vshrl.u32 %v477, 7
        %v479 = vsub.s32 0, %v478
        %v480 = vrot.slane %v475, %v479
        %v481 = vlaneseq
        %v482 = vshrl.u32 %v481, 7
        %v483 = vsub.s32 0, %v482
        %v484 = vrot.slane %v476, %v483
        %vm485 = vcmp.eq.s32.totalorder %v480, 1
        %vm486 = vcmp.eq.s32.totalorder %v484, 1
        %v487 = vsel %vm485, 0.0, %v463
        %v488 = vsel %vm486, 0.0, %v464
        %v489 = vadd.f32 %v417, %v406
        %v490 = vmul.f32 %v489, 0.5
        %v491 = vlaneseq
        %vm492 = vcmp.ge.s32.totalorder %v491, 0
        %vm493 = vcmp.lt.s32.totalorder %v491, 256
        %vm494 = vmand %vm492, %vm493
        %495 = vst.msk [vmem:[#allocation3] ss:$8 sm:$0x3] %vm494, %v490
        %496 = vst.msk [vmem:[#allocation3] ss:$8 sm:$0x0] %vm494, %v490
        %v497 = vadd.f32 %v420, %v415
        %v498 = vmul.f32 %v497, 0.5
        %s499 = scalar_lea.vmem [#allocation3], 1
        %500 = vst.msk [vmem:[%s499] ss:$8 sm:$0x3] %vm494, %v498
        %501 = vst.msk [vmem:[%s499] ss:$8 sm:$0x0] %vm494, %v498
        %v502 = vrot.slane %v384, 2
        %v503 = vrot.slane %v385, 2
        %v506 = vadd.f32 %v384, %v502
        %v507 = vadd.f32 %v385, %v503
        %v510 = vcombine.low %v506, %v507
        %v512 = vunpack.c.l.s4 1966171168
        %v513 = vunpack.c.0.s8 %v512
        %v514 = vlaneseq
        %v515 = vshrl.u32 %v514, 7
        %v516 = vsub.s32 %v513, %v515
        %v517 = vrot.slane %v510, %v516
        %v518 = vcombine.high %v517, %v517
        %v520 = vunpack.c.l.s4 1966171168
        %v521 = vunpack.c.0.s8 %v520
        %v522 = vlaneseq
        %v523 = vshrl.u32 %v522, 7
        %v524 = vsub.s32 %v521, %v523
        %v525 = vrot.slane %v518, %v524
        %s527 = scalar_lea.vmem [#allocation3], 2
        %528 = vst.msk [vmem:[%s527] ss:$8 sm:$0x3] %vm494, %v525
        %529 = vst.msk [vmem:[%s527] ss:$8 sm:$0x0] %vm494, %v525
        %v531 = vunpack.c.l.s4 1966171168
        %v532 = vunpack.c.0.s8 %v531
        %v533 = vlaneseq
        %v534 = vshrl.u32 %v533, 7
        %v535 = vsub.s32 %v532, %v534
        %v536 = vrot.slane %v517, %v535
        %s538 = scalar_lea.vmem [#allocation3], 3
        %539 = vst.msk [vmem:[%s538] ss:$8 sm:$0x3] %vm494, %v536
        %540 = vst.msk [vmem:[%s538] ss:$8 sm:$0x0] %vm494, %v536
        %541 = vst [vmem:[#allocation3] sm:$0xf0] %v487
        %542 = vst [vmem:[#allocation3 + $0x8] sm:$0xf0] %v488
        %v545 = vcombine.low %v471, %v472
        %v547 = vunpack.c.l.s4 1966171168
        %v548 = vunpack.c.0.s8 %v547
        %v549 = vlaneseq
        %v550 = vshrl.u32 %v549, 7
        %v551 = vsub.s32 %v548, %v550
        %v552 = vrot.slane %v545, %v551
        %v554 = vunpack.c.l.s4 1966171168
        %v555 = vunpack.c.0.s8 %v554
        %v556 = vlaneseq
        %v557 = vshrl.u32 %v556, 7
        %v558 = vsub.s32 %v555, %v557
        %v559 = vrot.slane %v552, %v558
        %s561 = scalar_lea.vmem [#allocation3], 16
        %562 = vst.msk [vmem:[%s561] ss:$8 sm:$0x3] %vm494, %v559
        %563 = vst.msk [vmem:[%s561] ss:$8 sm:$0x0] %vm494, %v559
        %v564 = vrot.slane %v384, 7
        %v565 = vrot.slane %v385, 7
        %568 = vst [vmem:[#allocation3 + $0x10] sm:$0x1e] %v564
        %569 = vst [vmem:[#allocation3 + $0x18] sm:$0x1e] %v565
        %vm574 = vcmask 1043456
        %v575 = vrot.slane %v450, 4
        %v576 = vrot.slane %v452, 4
        %v577 = vrot.slane %v454, 4
        %v578 = vsel %vm574, %v575, %v577
        %v579 = vrot.slane %v456, 4
        %v580 = vsel %vm574, %v576, %v579
        %585 = vst [vmem:[#allocation3 + $0x10] sm:$0xe0] %v575
        %586 = vst [vmem:[#allocation3 + $0x18] sm:$0xe0] %v576
        %587 = vst [vmem:[#allocation3 + $0x20] sm:$0x3f] %v578
        %588 = vst [vmem:[#allocation3 + $0x28] sm:$0x3f] %v580
        %v589 = vld [vmem:[#allocation3] sm:$0xff]
        %v590 = vld [vmem:[#allocation3 + $0x8] sm:$0xff]
        %v591 = vld [vmem:[#allocation3 + $0x10] sm:$0xff]
        %v592 = vld [vmem:[#allocation3 + $0x18] sm:$0xff]
        %v593 = vld [vmem:[#allocation3 + $0x20] sm:$0xff]
        %v594 = vld [vmem:[#allocation3 + $0x28] sm:$0xff]
        %v595 = vld [vmem:[#allocation3 + $0x30] sm:$0xff]
        %v596 = vld [vmem:[#allocation3 + $0x38] sm:$0xff]
        %v597 = vld [vmem:[#allocation3 + $0x40] sm:$0xff]
        %v598 = vld [vmem:[#allocation3 + $0x48] sm:$0xff]
        %v599 = vld [vmem:[#allocation3 + $0x50] sm:$0xff]
        %v600 = vld [vmem:[#allocation3 + $0x58] sm:$0xff]
        %v601 = vld [vmem:[#allocation3 + $0x60] sm:$0xff]
        %v602 = vld [vmem:[#allocation3 + $0x68] sm:$0xff]
        %v603 = vld [vmem:[#allocation3 + $0x70] sm:$0xff]
        %v604 = vld [vmem:[#allocation3 + $0x78] sm:$0xff]
        %v605 = vld [vmem:[#allocation3 + $0x80] sm:$0xff]
        %v606 = vld [vmem:[#allocation3 + $0x88] sm:$0xff]
        %v607 = vld [vmem:[#allocation3 + $0x90] sm:$0xff]
        %v608 = vld [vmem:[#allocation3 + $0x98] sm:$0xff]
        %v609 = vld [vmem:[#allocation3 + $0xa0] sm:$0xff]
        %v610 = vld [vmem:[#allocation3 + $0xa8] sm:$0xff]
        %v611 = vld [vmem:[#allocation3 + $0xb0] sm:$0xff]
        %v612 = vld [vmem:[#allocation3 + $0xb8] sm:$0xff]
        %v613 = vld [vmem:[#allocation3 + $0xc0] sm:$0xff]
        %v614 = vld [vmem:[#allocation3 + $0xc8] sm:$0xff]
        %v615 = vld [vmem:[#allocation3 + $0xd0] sm:$0xff]
        %v616 = vld [vmem:[#allocation3 + $0xd8] sm:$0xff]
        %v617 = vld [vmem:[#allocation3 + $0xe0] sm:$0xff]
        %v618 = vld [vmem:[#allocation3 + $0xe8] sm:$0xff]
        %v619 = vld [vmem:[#allocation3 + $0xf0] sm:$0xff]
        %v620 = vld [vmem:[#allocation3 + $0xf8] sm:$0xff]
        %621 = vxpose.xlu0.b32.start [1/16] %v589, 128
        %622 = vxpose.xlu0.b32.cont [2/16] %v591, 128
        %623 = vxpose.xlu0.b32.cont [3/16] %v593, 128
        %624 = vxpose.xlu0.b32.cont [4/16] %v595, 128
        %625 = vxpose.xlu0.b32.cont [5/16] %v597, 128
        %626 = vxpose.xlu0.b32.cont [6/16] %v599, 128
        %627 = vxpose.xlu0.b32.cont [7/16] %v601, 128
        %628 = vxpose.xlu0.b32.cont [8/16] %v603, 128
        %629 = vxpose.xlu0.b32.cont [9/16] %v605, 128
        %630 = vxpose.xlu0.b32.cont [10/16] %v607, 128
        %631 = vxpose.xlu0.b32.cont [11/16] %v609, 128
        %632 = vxpose.xlu0.b32.cont [12/16] %v611, 128
        %633 = vxpose.xlu0.b32.cont [13/16] %v613, 128
        %634 = vxpose.xlu0.b32.cont [14/16] %v615, 128
        %635 = vxpose.xlu0.b32.cont [15/16] %v617, 128
        %636 = vxpose.xlu0.b32.end [16/16] %v619, 128
        %v637 = vpop.trf.xlu0
        %v638 = vpop.trf.xlu0
        %v639 = vpop.trf.xlu0
        %v640 = vpop.trf.xlu0
        %v641 = vpop.trf.xlu0
        %v642 = vpop.trf.xlu0
        %v643 = vpop.trf.xlu0
        %v644 = vpop.trf.xlu0
        %v645 = vpop.trf.xlu0
        %v646 = vpop.trf.xlu0
        %v647 = vpop.trf.xlu0
        %v648 = vpop.trf.xlu0
        %v649 = vpop.trf.xlu0
        %v650 = vpop.trf.xlu0
        %v651 = vpop.trf.xlu0
        %v652 = vpop.trf.xlu0
        %653 = vxpose.xlu0.b32.start [1/16] %v590, 128
        %654 = vxpose.xlu0.b32.cont [2/16] %v592, 128
        %655 = vxpose.xlu0.b32.cont [3/16] %v594, 128
        %656 = vxpose.xlu0.b32.cont [4/16] %v596, 128
        %657 = vxpose.xlu0.b32.cont [5/16] %v598, 128
        %658 = vxpose.xlu0.b32.cont [6/16] %v600, 128
        %659 = vxpose.xlu0.b32.cont [7/16] %v602, 128
        %660 = vxpose.xlu0.b32.cont [8/16] %v604, 128
        %661 = vxpose.xlu0.b32.cont [9/16] %v606, 128
        %662 = vxpose.xlu0.b32.cont [10/16] %v608, 128
        %663 = vxpose.xlu0.b32.cont [11/16] %v610, 128
        %664 = vxpose.xlu0.b32.cont [12/16] %v612, 128
        %665 = vxpose.xlu0.b32.cont [13/16] %v614, 128
        %666 = vxpose.xlu0.b32.cont [14/16] %v616, 128
        %667 = vxpose.xlu0.b32.cont [15/16] %v618, 128
        %668 = vxpose.xlu0.b32.end [16/16] %v620, 128
        %v669 = vpop.trf.xlu0
        %v670 = vpop.trf.xlu0
        %v671 = vpop.trf.xlu0
        %v672 = vpop.trf.xlu0
        %v673 = vpop.trf.xlu0
        %v674 = vpop.trf.xlu0
        %v675 = vpop.trf.xlu0
        %v676 = vpop.trf.xlu0
        %v677 = vpop.trf.xlu0
        %v678 = vpop.trf.xlu0
        %v679 = vpop.trf.xlu0
        %v680 = vpop.trf.xlu0
        %v681 = vpop.trf.xlu0
        %v682 = vpop.trf.xlu0
        %v683 = vpop.trf.xlu0
        %v684 = vpop.trf.xlu0
        %vm685 = vcmask 179200
        %686 = vst.msk [vmem:[%s217] sm:$0xff] %vm685, %v637
        %687 = vst.msk [vmem:[%s217 + $0x8] sm:$0xff] %vm685, %v638
        %688 = vst.msk [vmem:[%s217 + $0x10] sm:$0xff] %vm685, %v639
        %689 = vst.msk [vmem:[%s217 + $0x18] sm:$0xff] %vm685, %v640
        %690 = vst.msk [vmem:[%s217 + $0x20] sm:$0xff] %vm685, %v641
        %691 = vst.msk [vmem:[%s217 + $0x28] sm:$0xff] %vm685, %v642
        %692 = vst.msk [vmem:[%s217 + $0x30] sm:$0xff] %vm685, %v643
        %693 = vst.msk [vmem:[%s217 + $0x38] sm:$0xff] %vm685, %v644
        %694 = vst.msk [vmem:[%s217 + $0x40] sm:$0xff] %vm685, %v645
        %695 = vst.msk [vmem:[%s217 + $0x48] sm:$0xff] %vm685, %v646
        %696 = vst.msk [vmem:[%s217 + $0x50] sm:$0xff] %vm685, %v647
        %697 = vst.msk [vmem:[%s217 + $0x58] sm:$0xff] %vm685, %v648
        %698 = vst.msk [vmem:[%s217 + $0x60] sm:$0xff] %vm685, %v649
        %699 = vst.msk [vmem:[%s217 + $0x68] sm:$0xff] %vm685, %v650
        %700 = vst.msk [vmem:[%s217 + $0x70] sm:$0xff] %vm685, %v651
        %701 = vst.msk [vmem:[%s217 + $0x78] sm:$0xff] %vm685, %v652
        %702 = vst.msk [vmem:[%s217 + $0x80] sm:$0xff] %vm685, %v669
        %703 = vst.msk [vmem:[%s217 + $0x88] sm:$0xff] %vm685, %v670
        %704 = vst.msk [vmem:[%s217 + $0x90] sm:$0xff] %vm685, %v671
        %705 = vst.msk [vmem:[%s217 + $0x98] sm:$0xff] %vm685, %v672
        %706 = vst.msk [vmem:[%s217 + $0xa0] sm:$0xff] %vm685, %v673
        %707 = vst.msk [vmem:[%s217 + $0xa8] sm:$0xff] %vm685, %v674
        %708 = vst.msk [vmem:[%s217 + $0xb0] sm:$0xff] %vm685, %v675
        %709 = vst.msk [vmem:[%s217 + $0xb8] sm:$0xff] %vm685, %v676
        %710 = vst.msk [vmem:[%s217 + $0xc0] sm:$0xff] %vm685, %v677
        %711 = vst.msk [vmem:[%s217 + $0xc8] sm:$0xff] %vm685, %v678
        %712 = vst.msk [vmem:[%s217 + $0xd0] sm:$0xff] %vm685, %v679
        %713 = vst.msk [vmem:[%s217 + $0xd8] sm:$0xff] %vm685, %v680
        %714 = vst.msk [vmem:[%s217 + $0xe0] sm:$0xff] %vm685, %v681
        %715 = vst.msk [vmem:[%s217 + $0xe8] sm:$0xff] %vm685, %v682
        %716 = vst.msk [vmem:[%s217 + $0xf0] sm:$0xff] %vm685, %v683
        %717 = vst.msk [vmem:[%s217 + $0xf8] sm:$0xff] %vm685, %v684
        %s718 = sand.u32 %s97, 1
        %s719 = scalar_lea.sflag [#allocation5], %s718
        %s720 = sand.u32 %s97, 1
        %s721 = smul.addr %s720, 256
        %s722 = scalar_lea.vmem [#allocation4], %s721
        %s723 = sand.u32 %s125, 1
        %s724 = scalar_lea.sflag [#allocation7], %s723
        %s725 = sand.u32 %s125, 1
        %s726 = smul.addr %s725, 256
        %s727 = scalar_lea.vmem [#allocation6], %s726
        // Predicated region
        $region29: #{head_forward.1} parent=27 // pred_check
          %p728 = pneg %p107
        $region30: #{head_forward.1} parent=27 // pred_check_branch
          %730 = sbr.rel (%p728) target = $region32
        $region31: #{head_forward.1} parent=27 // pred_region
          %s731 = smul.u32 32, %s26
          %s733 = ssub.s32 4096, 4096
          %734 = vsyncadd %s719, %s733
          %s735 = smul.addr %s25, 32
          %s736 = sadd.s32 %s731, %s735
          %s737 = smul.addr %s736, 128
          %s738 = scalar_lea.hbm %s2, %s737
          %s739 = sshll.u32 %s722, 4
          %s740 = int_to_ptr.vmem [resolvable:$true] %s739
          %745 = dma.vmem_to_hbm [thread:$0]  %s740, 4096, %s738, %s719, 128, 128, 8
        $region32: #{head_forward.1} parent=27 // pred_fallthru
          _
        // Predicated region
        $region33: #{head_forward.1} parent=27 // pred_check
          %p746 = pneg %p135
        $region34: #{head_forward.1} parent=27 // pred_check_branch
          %748 = sbr.rel (%p746) target = $region36
        $region35: #{head_forward.1} parent=27 // pred_region
          %s749 = smul.u32 32, %s26
          %s751 = ssub.s32 4096, 4096
          %752 = vsyncadd %s724, %s751
          %s753 = smul.addr %s25, 32
          %s754 = sadd.s32 %s749, %s753
          %s755 = smul.addr %s754, 128
          %s756 = scalar_lea.hbm %s3, %s755
          %s757 = sshll.u32 %s727, 4
          %s758 = int_to_ptr.vmem [resolvable:$true] %s757
          %763 = dma.vmem_to_hbm [thread:$0]  %s758, 4096, %s756, %s724, 128, 128, 8
        $region36: #{head_forward.1} parent=27 // pred_fallthru
          _
      $region28: #{head_forward.1} parent=5 // pred_fallthru
        _
      %p764 = scmp.le.s32.totalorder 2, %s16
      // Predicated region
      $region37: #{head_forward.1} parent=5 // pred_check
        %p765 = pneg %p764
      $region38: #{head_forward.1} parent=5 // pred_check_branch
        %767 = sbr.rel (%p765) target = $region40
      $region39: #{head_forward.1} parent=5 // pred_region
        %s768 = ssub.s32 %s16, 2
        // Predicated region
        $region41: #{head_forward.1} parent=39 // pred_check
          %p769 = pneg %p113
        $region42: #{head_forward.1} parent=39 // pred_check_branch
          %771 = sbr.rel (%p769) target = $region44
        $region43: #{head_forward.1} parent=39 // pred_region
          %s772 = sand.u32 %s98, 1
          %s773 = scalar_lea.sflag [#allocation5], %s772
          %s774 = sand.u32 %s98, 1
          %s775 = smul.addr %s774, 256
          %s776 = scalar_lea.vmem [#allocation4], %s775
          %777 = dma.done %s773, 4096
        $region44: #{head_forward.1} parent=39 // pred_fallthru
          _
        // Predicated region
        $region45: #{head_forward.1} parent=39 // pred_check
          %p778 = pneg %p141
        $region46: #{head_forward.1} parent=39 // pred_check_branch
          %780 = sbr.rel (%p778) target = $region48
        $region47: #{head_forward.1} parent=39 // pred_region
          %s781 = sand.u32 %s126, 1
          %s782 = scalar_lea.sflag [#allocation7], %s781
          %s783 = sand.u32 %s126, 1
          %s784 = smul.addr %s783, 256
          %s785 = scalar_lea.vmem [#allocation6], %s784
          %786 = dma.done %s782, 4096
        $region48: #{head_forward.1} parent=39 // pred_fallthru
          _
      $region40: #{head_forward.1} parent=5 // pred_fallthru
        _
    $region6: #{head_forward.1} parent=1 // loop_footer
      %s20 = sadd.s32 1, %s16
    $region7: #{head_forward.1} parent=1 // loop_footer_branch
      %15 = sbr.rel target = $region3
    $region8: #{head_forward.1} parent=1 // loop_exit
      _
    %787 = vsyncpa [#allocation5], 1
    %s788 = scalar_lea.sflag [#allocation5], 1
    %789 = vsyncpa %s788, 1
    %790 = vsyncpa [#allocation7], 1
    %s791 = scalar_lea.sflag [#allocation7], 1
    %792 = vsyncpa %s791, 1

</llo_original>
